<compile_context>
chip_gen: v6e
topology: v6e:2x2x1
jax: 0.10.0
libtpu: 0.0.40
codegen_flags: <defaults>
</compile_context>

<pallas_src>
import functools

import jax
import jax.numpy as jnp
from jax import lax
from jax.experimental import pallas as pl
from jax.experimental.pallas import tpu as pltpu

NUM_CLASSES = 3
_MiB = 1024 * 1024
_ROW_CAP = 8192          # max flat activation rows per VMEM block


def _largest_divisor_leq(n, cap):
    for d in range(min(n, cap), 0, -1):
        if n % d == 0:
            return d
    return 1


def _pick_chunk(rows, cap):
    """Largest divisor of `rows` <= cap, preferring multiples of 8."""
    cap = max(1, min(rows, cap))
    best, best8 = 1, 0
    for d in range(1, cap + 1):
        if rows % d == 0:
            best = d
            if d % 8 == 0:
                best8 = d
    return best8 if best8 else best


def _pick_bands(h, w, halo):
    """Smallest divisor of H so one band's flat rows fit the VMEM row cap."""
    for nb in range(1, h + 1):
        if h % nb == 0 and (h // nb + halo) * w <= _ROW_CAP:
            return nb
    return h


def _pad_up(v, m):
    return -(-v // m) * m


def _block_bytes(shape, itemsize):
    if not shape:
        return itemsize
    s = list(shape)
    s[-1] = _pad_up(s[-1], 128)
    if len(s) >= 2:
        s[-2] = _pad_up(s[-2], 16)
    n = 1
    for d in s:
        n *= d
    return n * itemsize


def _vmem_limit(single_buffer_bytes):
    # double-buffered blocks + margin for Mosaic internals; clamp under v7x VMEM.
    return int(min(56 * _MiB, max(32 * _MiB, 2 * single_buffer_bytes + 16 * _MiB)))


# ----------------------------------------------------------------------------
# Fused Conv3d(3x3x3, pad=1) + bias + ReLU
# ----------------------------------------------------------------------------
def _conv_kernel(x0_ref, x1_ref, x2_ref, w_ref, b_ref, o_ref, *,
                 offsets, chunk, n_chunks):
    """One (cout_block, sample, frame, band) grid step.

    x{0,1,2}_ref : (R_in, K) bf16/f32  padded plane band for dz = 0,1,2
    w_ref        : (3, n_taps, K, Cout_blk)   resident across the inner grid
    b_ref        : (1, Cout_blk) f32
    o_ref        : (R_out, Cout_blk)
    All taps of a row chunk are accumulated in one chained f32 value and the
    chunk is stored once with bias + ReLU fused (no VMEM accumulator, no RMW).
    """
    xs = (x0_ref, x1_ref, x2_ref)
    bias = b_ref[...].astype(jnp.float32)

    def chunk_body(c, carry):
        r0 = c * chunk
        if chunk % 8 == 0:
            r0 = pl.multiple_of(r0, 8)
        acc = None
        for dz in range(3):
            x = xs[dz]
            for k, off in enumerate(offsets):
                part = jnp.dot(x[pl.ds(r0 + off, chunk), :], w_ref[dz, k],
                               preferred_element_type=jnp.float32)
                acc = part if acc is None else acc + part
        y = jnp.maximum(acc + bias, 0.0)
        o_ref[pl.ds(r0, chunk), :] = y.astype(o_ref.dtype)
        return carry

    lax.fori_loop(0, n_chunks, chunk_body, 0)


def _conv_call(xf, wk, b2, *, offsets, r_out, cout_blk, out_dtype):
    """xf: (N, T+2, NB, R_in, K); wk: (3, n_taps, K, Cout); b2: (1, Cout)."""
    n, tp2, nb, r_in, ceff = xf.shape
    t = tp2 - 2
    n_taps = wk.shape[1]
    cout = wk.shape[-1]
    assert cout % cout_blk == 0
    n_co = cout // cout_blk

    chunk = _pick_chunk(r_out, max(256, 131072 // cout_blk))
    n_chunks = r_out // chunk

    def x_spec(dz):
        return pl.BlockSpec(
            (None, None, None, r_in, ceff),
            lambda co, ni, ti, bi, dz=dz: (ni, ti + dz, bi, 0, 0))

    w_spec = pl.BlockSpec((3, n_taps, ceff, cout_blk),
                          lambda co, ni, ti, bi: (0, 0, 0, co))
    b_spec = pl.BlockSpec((1, cout_blk), lambda co, ni, ti, bi: (0, co))
    o_spec = pl.BlockSpec((None, None, None, r_out, cout_blk),
                          lambda co, ni, ti, bi: (ni, ti, bi, 0, co))

    est = (3 * _block_bytes((r_in, ceff), 2)
           + _block_bytes((3 * n_taps * ceff, cout_blk), 2)
           + _block_bytes((1, cout_blk), 4)
           + _block_bytes((r_out, cout_blk), 2))

    return pl.pallas_call(
        functools.partial(_conv_kernel, offsets=offsets, chunk=chunk,
                          n_chunks=n_chunks),
        grid=(n_co, n, t, nb),
        in_specs=[x_spec(0), x_spec(1), x_spec(2), w_spec, b_spec],
        out_specs=o_spec,
        out_shape=jax.ShapeDtypeStruct((n, t, nb, r_out, cout), out_dtype),
        compiler_params=pltpu.CompilerParams(
            dimension_semantics=("parallel", "parallel", "parallel", "parallel"),
            vmem_limit_bytes=_vmem_limit(est)),
    )(xf, xf, xf, wk, b2)


def conv3d_3x3_relu(x, w, b, *, mode=None):
    """PyTorch Conv3d(Cin, Cout, kernel=3, padding=1) + ReLU, channels-last.

    x: (N, T, H, W, Cin);  w: (3, 3, 3, Cin, Cout) == torch_w.permute(2,3,4,1,0);
    b: (Cout,).  Returns (N, T, H, W, Cout) in x.dtype.
    """
    n, t, hgt, wid, cin = x.shape
    cout = w.shape[-1]
    if mode is None:
        mode = "fold9" if cin <= 4 else ("fold3" if cin <= 128 else "nofold")
    cout_blk = cout if cout <= 256 else 256
    wk = w.astype(x.dtype)
    b2 = b.reshape(1, cout).astype(jnp.float32)

    if mode == "fold9":
        # Fold dy and dx into channels (K = 9*Cin): no halo, row-blockable.
        xp = jnp.pad(x, ((0, 0), (1, 1), (1, 1), (1, 1), (0, 0)))
        nb = _pick_bands(hgt, wid, halo=0)
        band = hgt // nb
        cols = [xp[:, :, dy:dy + hgt, dx:dx + wid, :]
                for dy in range(3) for dx in range(3)]
        xf = jnp.concatenate(cols, axis=-1)                  # (N,T+2,H,W,9C)
        xf = xf.reshape(n, t + 2, nb, band * wid, 9 * cin)
        out = _conv_call(xf, wk.reshape(3, 1, 9 * cin, cout), b2,
                         offsets=(0,), r_out=band * wid,
                         cout_blk=cout_blk, out_dtype=x.dtype)
        return out.reshape(n, t, hgt, wid, cout)

    if mode == "fold3":
        # Fold dx only (K = 3*Cin); dy is a row offset; H split into halo bands.
        xp = jnp.pad(x, ((0, 0), (1, 1), (1, 1), (1, 1), (0, 0)))
        nb = _pick_bands(hgt, wid, halo=2)
        band = hgt // nb
        bands = []
        for bi in range(nb):
            h0 = bi * band
            slabs = [xp[:, :, h0:h0 + band + 2, dx:dx + wid, :]
                     for dx in range(3)]
            bands.append(jnp.concatenate(slabs, axis=-1))    # (N,T+2,band+2,W,3C)
        xf = jnp.stack(bands, axis=2)
        xf = xf.reshape(n, t + 2, nb, (band + 2) * wid, 3 * cin)
        out = _conv_call(xf, wk.reshape(3, 3, 3 * cin, cout), b2,
                         offsets=(0, wid, 2 * wid), r_out=band * wid,
                         cout_blk=cout_blk, out_dtype=x.dtype)
        return out.reshape(n, t, hgt, wid, cout)

    # "nofold": K = Cin (already fills the MXU contraction); dy/dx are static
    # flat row offsets inside the padded (H+3)x(W+2) plane. The 2 pad columns of
    # each output row are garbage and sliced off (fused into the next op's pad).
    wp = wid + 2
    xp = jnp.pad(x, ((0, 0), (1, 1), (1, 2), (1, 1), (0, 0)))  # T:1/1 H:1/2 W:1/1
    xf = xp.reshape(n, t + 2, 1, (hgt + 3) * wp, cin)
    offsets = tuple(dy * wp + dx for dy in range(3) for dx in range(3))
    out = _conv_call(xf, wk.reshape(3, 9, cin, cout), b2,
                     offsets=offsets, r_out=hgt * wp,
                     cout_blk=cout_blk, out_dtype=x.dtype)
    out = out.reshape(n, t, hgt, wp, cout)[:, :, :, :wid, :]
    return out


# ----------------------------------------------------------------------------
# Fused tiled matmul + bias (+ReLU) for the classifier
# ----------------------------------------------------------------------------
def _dense_kernel(x_ref, w_ref, b_ref, o_ref, acc_ref, *, apply_relu):
    k = pl.program_id(2)

    @pl.when(k == 0)
    def _init():
        acc_ref[...] = jnp.zeros_like(acc_ref)

    acc_ref[...] += jnp.dot(x_ref[...], w_ref[...],
                            preferred_element_type=jnp.float32)

    @pl.when(k == pl.num_programs(2) - 1)
    def _finalize():
        y = acc_ref[...] + b_ref[...].astype(jnp.float32)
        if apply_relu:
            y = jnp.maximum(y, 0.0)
        o_ref[...] = y.astype(o_ref.dtype)


def dense(x, w, b, *, apply_relu=False, out_dtype=None,
          bm=128, bn=2048, bk=3584):
    """y = x @ w + b, with w stored (in, out) == torch_weight.T; K/N-tiled."""
    m, k = x.shape
    k2, nf = w.shape
    assert k == k2 and b.shape == (nf,)
    out_dtype = out_dtype or x.dtype
    bm = _largest_divisor_leq(m, bm)
    bn = _largest_divisor_leq(nf, bn)
    bk = _largest_divisor_leq(k, bk)

    est = (_block_bytes((bm, bk), x.dtype.itemsize)
           + _block_bytes((bk, bn), 2)
           + _block_bytes((1, bn), 4)
           + _block_bytes((bm, bn), jnp.dtype(out_dtype).itemsize)
           + _block_bytes((bm, bn), 4))

    return pl.pallas_call(
        functools.partial(_dense_kernel, apply_relu=apply_relu),
        grid=(m // bm, nf // bn, k // bk),
        in_specs=[
            pl.BlockSpec((bm, bk), lambda i, j, kk: (i, kk)),
            pl.BlockSpec((bk, bn), lambda i, j, kk: (kk, j)),
            pl.BlockSpec((1, bn), lambda i, j, kk: (0, j)),
        ],
        out_specs=pl.BlockSpec((bm, bn), lambda i, j, kk: (i, j)),
        out_shape=jax.ShapeDtypeStruct((m, nf), out_dtype),
        scratch_shapes=[pltpu.VMEM((bm, bn), jnp.float32)],
        compiler_params=pltpu.CompilerParams(
            dimension_semantics=("parallel", "parallel", "arbitrary"),
            vmem_limit_bytes=_vmem_limit(est)),
    )(x, w.astype(x.dtype), b.reshape(1, nf).astype(jnp.float32))


# ----------------------------------------------------------------------------
# MaxPool3d (memory-bound glue)
# ----------------------------------------------------------------------------
def maxpool3d(x, kt):
    """MaxPool3d(kernel=(kt,2,2), stride=(kt,2,2)), channels-last.
    # TODO(synk): pooling (and the per-dz activation re-read of the two early
    # convs) is left to XLA / BlockSpec streaming; fusing the 2x2 spatial pool
    # into the conv epilogue and a manual 3-plane ring buffer would cut the
    # remaining HBM traffic further but are omitted for robustness.
    """
    n, t, h, w, c = x.shape
    assert t % kt == 0 and h % 2 == 0 and w % 2 == 0
    x = x.reshape(n, t // kt, kt, h // 2, 2, w // 2, 2, c)
    return x.max(axis=(2, 4, 6))


# ----------------------------------------------------------------------------
# VGG3D forward
# ----------------------------------------------------------------------------
_POOL_AFTER = {0: 1, 1: 2, 3: 2, 5: 2, 7: 2}   # conv index -> temporal pool size


def vgg3d_forward(x, params):
    """x: (N, 3, T, H, W) float32 in PyTorch NCTHW layout -> (N, num_classes)."""
    h = jnp.transpose(x, (0, 2, 3, 4, 1)).astype(jnp.bfloat16)  # (N,T,H,W,C)
    for i, cp in enumerate(params["conv"]):
        h = conv3d_3x3_relu(h, cp["w"], cp["b"])
        kt = _POOL_AFTER.get(i)
        if kt is not None:
            h = maxpool3d(h, kt)
    n = h.shape[0]
    # PyTorch's x.view(B, -1) flattens NCTHW order -> go back to (N, C, T, H, W).
    feat = jnp.transpose(h, (0, 4, 1, 2, 3)).reshape(n, -1)
    assert feat.shape[1] == params["fc1_w"].shape[0], feat.shape
    h1 = dense(feat, params["fc1_w"], params["fc1_b"], apply_relu=True)
    # TODO(synk): nn.Dropout is identity at inference (eval mode); RNG not modeled.
    h2 = dense(h1, params["fc2_w"], params["fc2_b"], apply_relu=True)
    logits = dense(h2, params["fc3_w"], params["fc3_b"], apply_relu=False,
                   out_dtype=jnp.float32)
    return logits


# ----------------------------------------------------------------------------
# Deterministic parameter init (shapes follow the module's __init__)
# ----------------------------------------------------------------------------
_CONV_CFG = [(3, 64), (64, 128), (128, 256), (256, 256),
             (256, 512), (512, 512), (512, 512), (512, 512)]


def init_params(key):
    # TODO(synk): torchvision vgg16(pretrained=True) weights cannot be loaded
    # in-script (no files/network; the reference forward never reuses vgg2d),
    # so He-initialized random weights are used.
    keys = jax.random.split(key, len(_CONV_CFG) + 3)
    convs = []
    for i, (cin, cout) in enumerate(_CONV_CFG):
        std = (2.0 / (27 * cin)) ** 0.5
        w = (jax.random.normal(keys[i], (3, 3, 3, cin, cout), jnp.float32)
             * std).astype(jnp.bfloat16)
        convs.append(dict(w=w, b=jnp.zeros((cout,), jnp.float32)))

    def fc(k, fin, fout, relu=True):
        std = (2.0 / fin) ** 0.5 if relu else (1.0 / fin) ** 0.5
        w = (jax.random.normal(k, (fin, fout), jnp.float32) * std
             ).astype(jnp.bfloat16)
        return w, jnp.zeros((fout,), jnp.float32)

    fc1_w, fc1_b = fc(keys[-3], 512 * 7 * 7 * 1, 4096)
    fc2_w, fc2_b = fc(keys[-2], 4096, 4096)
    fc3_w, fc3_b = fc(keys[-1], 4096, NUM_CLASSES, relu=False)
    return dict(conv=convs, fc1_w=fc1_w, fc1_b=fc1_b,
                fc2_w=fc2_w, fc2_b=fc2_b, fc3_w=fc3_w, fc3_b=fc3_b)


# ----------------------------------------------------------------------------
# Small correctness self-checks of every kernel mode against XLA references
# ----------------------------------------------------------------------------
def _self_test():
    def ref_conv(x, w, b):
        y = jax.lax.conv_general_dilated(
            x, w, window_strides=(1, 1, 1), padding="SAME",
            dimension_numbers=("NDHWC", "DHWIO", "NDHWC"),
            precision=jax.lax.Precision.HIGHEST)
        return jnp.maximum(y + b, 0.0)

    for idx, (cin, mode) in enumerate(((3, "fold9"), (8, "fold3"), (8, "nofold"))):
        kx, kw, kb = jax.random.split(jax.random.fold_in(jax.random.PRNGKey(42),
                                                         idx), 3)
        x = jax.random.normal(kx, (1, 4, 8, 8, cin), jnp.float32)
        w = jax.random.normal(kw, (3, 3, 3, cin, 16), jnp.float32) * 0.1
        b = jax.random.normal(kb, (16,), jnp.float32) * 0.1
        got = conv3d_3x3_relu(x, w, b, mode=mode)
        ref = ref_conv(x, w, b)
        err = float(jnp.max(jnp.abs(got - ref)))
        assert jnp.allclose(got, ref, atol=2e-3, rtol=2e-3), (mode, err)

    k1, k2 = jax.random.split(jax.random.PRNGKey(7))
    xa = jax.random.normal(k1, (2, 256), jnp.float32)
    wa = jax.random.normal(k2, (256, 48), jnp.float32) * 0.1
    ba = jnp.ones((48,), jnp.float32) * 0.05
    gd = dense(xa, wa, ba, apply_relu=True)
    rd = jnp.maximum(
        jnp.dot(xa, wa, precision=jax.lax.Precision.HIGHEST) + ba, 0.0)
    assert jnp.allclose(gd, rd, atol=2e-3, rtol=2e-3)


if __name__ == "__main__":
    _self_test()

    key = jax.random.PRNGKey(0)
    kp, kx = jax.random.split(key)
    params = init_params(kp)

    # Canonical VGG3D input (batch, 3, 16 frames, 224, 224): the feature stack
    # reduces it to (N, 512, 1, 7, 7) -- exactly the 512*7*7*1 in_features the
    # module's classifier hardcodes (smaller spatial shapes would not match it).
    x = jax.random.normal(kx, (2, 3, 16, 224, 224), jnp.float32)

    fwd = jax.jit(vgg3d_forward)
    logits = fwd(x, params)
    jax.block_until_ready(logits)

    assert logits.shape == (2, NUM_CLASSES), logits.shape
    assert bool(jnp.all(jnp.isfinite(logits)))
    print("KERNEL_OK")
</pallas_src>

<mosaic_0001>
module attributes {stable_mosaic.version = 11 : i64} {
  func.func @_conv_kernel(%arg0: i32, %arg1: i32, %arg2: i32, %arg3: i32, %arg4: memref<1x1x1x64x27xf32, #tpu.memory_space<vmem>>, %arg5: memref<1x1x1x64x27xf32, #tpu.memory_space<vmem>>, %arg6: memref<1x1x1x64x27xf32, #tpu.memory_space<vmem>>, %arg7: memref<3x1x27x16xf32, #tpu.memory_space<vmem>>, %arg8: memref<1x16xf32, #tpu.memory_space<vmem>>, %arg9: memref<1x1x1x64x16xf32, #tpu.memory_space<vmem>>) attributes {dimension_semantics = [#tpu.dimension_semantics<parallel>, #tpu.dimension_semantics<parallel>, #tpu.dimension_semantics<parallel>, #tpu.dimension_semantics<parallel>], iteration_bounds = array<i64: 1, 1, 4, 1>, scalar_prefetch = 0 : i64, scratch_operands = 0 : i64, tpu.core_type = #tpu.core_type<tc>, window_params = [{transform_indices = @transform_0, window_bounds = array<i64: 1, 1, 1, 64, 27>}, {transform_indices = @transform_1, window_bounds = array<i64: 1, 1, 1, 64, 27>}, {transform_indices = @transform_2, window_bounds = array<i64: 1, 1, 1, 64, 27>}, {transform_indices = @transform_3, window_bounds = array<i64: 3, 1, 27, 16>}, {transform_indices = @transform_4, window_bounds = array<i64: 1, 16>}, {transform_indices = @transform_5, window_bounds = array<i64: 1, 1, 1, 64, 16>}]} {
    %c0 = arith.constant 0 : index
    %c0_0 = arith.constant 0 : index
    %0 = vector.load %arg8[%c0, %c0_0] : memref<1x16xf32, #tpu.memory_space<vmem>>, vector<1x16xf32>
    %c0_i32 = arith.constant 0 : i32
    %c64_i32 = arith.constant 64 : i32
    %1 = arith.muli %c0_i32, %c64_i32 : i32
    %2 = tpu.assume_multiple %1, 8 : i32
    %c0_i32_1 = arith.constant 0 : i32
    %3 = arith.addi %2, %c0_i32_1 : i32
    %c0_2 = arith.constant 0 : index
    %c0_3 = arith.constant 0 : index
    %c0_4 = arith.constant 0 : index
    %4 = arith.index_cast %3 : i32 to index
    %c0_5 = arith.constant 0 : index
    %5 = vector.load %arg4[%c0_2, %c0_3, %c0_4, %4, %c0_5] : memref<1x1x1x64x27xf32, #tpu.memory_space<vmem>>, vector<1x1x1x64x27xf32>
    %6 = vector.shape_cast %5 : vector<1x1x1x64x27xf32> to vector<64x27xf32>
    %c0_6 = arith.constant 0 : index
    %c0_7 = arith.constant 0 : index
    %c0_8 = arith.constant 0 : index
    %c0_9 = arith.constant 0 : index
    %7 = vector.load %arg7[%c0_6, %c0_7, %c0_8, %c0_9] : memref<3x1x27x16xf32, #tpu.memory_space<vmem>>, vector<1x1x27x16xf32>
    %8 = vector.shape_cast %7 : vector<1x1x27x16xf32> to vector<27x16xf32>
    %cst = arith.constant dense<0.000000e+00> : vector<64x16xf32>
    %9 = tpu.matmul %6, %8, %cst {dimension_numbers = #tpu.dot_dimension_numbers<[1], [0], [0], [1], [0, 0, 1, 1], [], []>} : vector<64x27xf32>, vector<27x16xf32>, vector<64x16xf32> -> vector<64x16xf32>
    %c0_i32_10 = arith.constant 0 : i32
    %10 = arith.addi %2, %c0_i32_10 : i32
    %c0_11 = arith.constant 0 : index
    %c0_12 = arith.constant 0 : index
    %c0_13 = arith.constant 0 : index
    %11 = arith.index_cast %10 : i32 to index
    %c0_14 = arith.constant 0 : index
    %12 = vector.load %arg5[%c0_11, %c0_12, %c0_13, %11, %c0_14] : memref<1x1x1x64x27xf32, #tpu.memory_space<vmem>>, vector<1x1x1x64x27xf32>
    %13 = vector.shape_cast %12 : vector<1x1x1x64x27xf32> to vector<64x27xf32>
    %c1 = arith.constant 1 : index
    %c0_15 = arith.constant 0 : index
    %c0_16 = arith.constant 0 : index
    %c0_17 = arith.constant 0 : index
    %14 = vector.load %arg7[%c1, %c0_15, %c0_16, %c0_17] : memref<3x1x27x16xf32, #tpu.memory_space<vmem>>, vector<1x1x27x16xf32>
    %15 = vector.shape_cast %14 : vector<1x1x27x16xf32> to vector<27x16xf32>
    %cst_18 = arith.constant dense<0.000000e+00> : vector<64x16xf32>
    %16 = tpu.matmul %13, %15, %cst_18 {dimension_numbers = #tpu.dot_dimension_numbers<[1], [0], [0], [1], [0, 0, 1, 1], [], []>} : vector<64x27xf32>, vector<27x16xf32>, vector<64x16xf32> -> vector<64x16xf32>
    %17 = arith.addf %9, %16 : vector<64x16xf32>
    %c0_i32_19 = arith.constant 0 : i32
    %18 = arith.addi %2, %c0_i32_19 : i32
    %c0_20 = arith.constant 0 : index
    %c0_21 = arith.constant 0 : index
    %c0_22 = arith.constant 0 : index
    %19 = arith.index_cast %18 : i32 to index
    %c0_23 = arith.constant 0 : index
    %20 = vector.load %arg6[%c0_20, %c0_21, %c0_22, %19, %c0_23] : memref<1x1x1x64x27xf32, #tpu.memory_space<vmem>>, vector<1x1x1x64x27xf32>
    %21 = vector.shape_cast %20 : vector<1x1x1x64x27xf32> to vector<64x27xf32>
    %c2 = arith.constant 2 : index
    %c0_24 = arith.constant 0 : index
    %c0_25 = arith.constant 0 : index
    %c0_26 = arith.constant 0 : index
    %22 = vector.load %arg7[%c2, %c0_24, %c0_25, %c0_26] : memref<3x1x27x16xf32, #tpu.memory_space<vmem>>, vector<1x1x27x16xf32>
    %23 = vector.shape_cast %22 : vector<1x1x27x16xf32> to vector<27x16xf32>
    %cst_27 = arith.constant dense<0.000000e+00> : vector<64x16xf32>
    %24 = tpu.matmul %21, %23, %cst_27 {dimension_numbers = #tpu.dot_dimension_numbers<[1], [0], [0], [1], [0, 0, 1, 1], [], []>} : vector<64x27xf32>, vector<27x16xf32>, vector<64x16xf32> -> vector<64x16xf32>
    %25 = arith.addf %17, %24 : vector<64x16xf32>
    %26 = vector.broadcast %0 : vector<1x16xf32> to vector<64x16xf32>
    %27 = arith.addf %25, %26 : vector<64x16xf32>
    %cst_28 = arith.constant 0.000000e+00 : f32
    %28 = vector.broadcast %cst_28 : f32 to vector<64x16xf32>
    %29 = arith.maximumf %27, %28 : vector<64x16xf32>
    %c0_29 = arith.constant 0 : index
    %c0_30 = arith.constant 0 : index
    %c0_31 = arith.constant 0 : index
    %30 = arith.index_cast %2 : i32 to index
    %c0_32 = arith.constant 0 : index
    %31 = vector.load %arg9[%c0_29, %c0_30, %c0_31, %30, %c0_32] : memref<1x1x1x64x16xf32, #tpu.memory_space<vmem>>, vector<1x1x1x64x16xf32>
    %32 = vector.shape_cast %31 : vector<1x1x1x64x16xf32> to vector<64x16xf32>
    %33 = vector.shape_cast %29 : vector<64x16xf32> to vector<1x1x1x64x16xf32>
    tpu.vector_store %arg9[%c0_29, %c0_30, %c0_31, %30, %c0_32], %33 {strides = array<i32>} : memref<1x1x1x64x16xf32, #tpu.memory_space<vmem>>, vector<1x1x1x64x16xf32>,
    %c1_i32 = arith.constant 1 : i32
    return
  }
  func.func @transform_0(%arg0: i32, %arg1: i32, %arg2: i32, %arg3: i32) -> (i32, i32, i32, i32, i32) {
    %c0_i32 = arith.constant 0 : i32
    %0 = arith.addi %arg2, %c0_i32 : i32
    %c0_i32_0 = arith.constant 0 : i32
    %c0_i32_1 = arith.constant 0 : i32
    %c0_i32_2 = arith.constant 0 : i32
    return %arg1, %0, %arg3, %c0_i32_0, %c0_i32_1 : i32, i32, i32, i32, i32
  }
  func.func @transform_1(%arg0: i32, %arg1: i32, %arg2: i32, %arg3: i32) -> (i32, i32, i32, i32, i32) {
    %c1_i32 = arith.constant 1 : i32
    %0 = arith.addi %arg2, %c1_i32 : i32
    %c0_i32 = arith.constant 0 : i32
    %c0_i32_0 = arith.constant 0 : i32
    %c0_i32_1 = arith.constant 0 : i32
    return %arg1, %0, %arg3, %c0_i32, %c0_i32_0 : i32, i32, i32, i32, i32
  }
  func.func @transform_2(%arg0: i32, %arg1: i32, %arg2: i32, %arg3: i32) -> (i32, i32, i32, i32, i32) {
    %c2_i32 = arith.constant 2 : i32
    %0 = arith.addi %arg2, %c2_i32 : i32
    %c0_i32 = arith.constant 0 : i32
    %c0_i32_0 = arith.constant 0 : i32
    %c0_i32_1 = arith.constant 0 : i32
    return %arg1, %0, %arg3, %c0_i32, %c0_i32_0 : i32, i32, i32, i32, i32
  }
  func.func @transform_3(%arg0: i32, %arg1: i32, %arg2: i32, %arg3: i32) -> (i32, i32, i32, i32) {
    %c0_i32 = arith.constant 0 : i32
    %c0_i32_0 = arith.constant 0 : i32
    %c0_i32_1 = arith.constant 0 : i32
    %c0_i32_2 = arith.constant 0 : i32
    return %c0_i32, %c0_i32_0, %c0_i32_1, %arg0 : i32, i32, i32, i32
  }
  func.func @transform_4(%arg0: i32, %arg1: i32, %arg2: i32, %arg3: i32) -> (i32, i32) {
    %c0_i32 = arith.constant 0 : i32
    %c0_i32_0 = arith.constant 0 : i32
    return %c0_i32, %arg0 : i32, i32
  }
  func.func @transform_5(%arg0: i32, %arg1: i32, %arg2: i32, %arg3: i32) -> (i32, i32, i32, i32, i32) {
    %c0_i32 = arith.constant 0 : i32
    %c0_i32_0 = arith.constant 0 : i32
    return %arg1, %arg2, %arg3, %c0_i32, %arg0 : i32, i32, i32, i32, i32
  }
}

</mosaic_0001>

<llo_original>
// kernel: tpu_custom_call.1
$region0: #{tpu_custom_call.1}
  #allocation0 [shape = 'u32[]', space=smem, size = 0x4, offset = 0x4, fixed_abs, tag = 'smem constant byte address 0x4 - core index']
  #allocation1 [shape = 'u32[144,128]{1,0:T(1,128)}', space=vmem, size = 0x12000, scoped, tag = 'internal scratch']
  %s0 = inlined_call_operand.vmem [shape: f32[1,6,1,64,27], index: 0, kind: input, shape index: {}]
  %s1 = inlined_call_operand.vmem [shape: f32[1,6,1,64,27], index: 1, kind: input, shape index: {}]
  %s2 = inlined_call_operand.vmem [shape: f32[1,6,1,64,27], index: 2, kind: input, shape index: {}]
  %s3 = inlined_call_operand.vmem [shape: f32[3,1,27,16], index: 3, kind: input, shape index: {}]
  %s4 = inlined_call_operand.vmem [shape: f32[1,16], index: 4, kind: input, shape index: {}]
  %s5 = inlined_call_operand.vmem [shape: f32[1,4,1,64,16], index: 5, kind: output, shape index: {}]
  %s6 = sld [smem:[#allocation0]]
  $region53: #{tpu_custom_call.1} parent=0
    _
  %s8 = ssub.s32 1, %s6
  %s9 = scalar_select 0, %s8, %s6
  loop: start=0, step=1, limit=6
  $region2: #{tpu_custom_call.1} parent=0 // loop_pre_header
    _
  $region3: #{tpu_custom_call.1} parent=0 // loop_header
    %s11 = sphi 0, %s15
    %p12 = scmp.ge.s32.totalorder %s11, 6
    %s18 = sphi 0, %s44
    %s19 = sphi 0, %s40
    %s20 = sphi 0, %s36
    %s21 = sphi 0, %s32
    %s22 = sphi 0, %s18
    %s23 = sphi 0, %s19
    %s24 = sphi 0, %s20
    %s25 = sphi 0, %s21
    %s26 = sphi 0, %s22
    %s27 = sphi 0, %s23
    %s28 = sphi 0, %s24
    %s29 = sphi 0, %s25
    %s51 = sphi 0, %s53
    %s54 = sphi 0, %s51
    %s55 = sphi 0, %s54
    %s71 = sphi 0, %s55
    %s83 = sphi 0, %s85
    %s86 = sphi 0, %s83
    %s87 = sphi 0, %s86
    %s103 = sphi 0, %s87
    %s115 = sphi 0, %s117
    %s118 = sphi 0, %s115
    %s119 = sphi 0, %s118
    %s135 = sphi 0, %s119
    %s141 = sphi 0, %s143
    %s144 = sphi 0, %s141
    %s145 = sphi 0, %s144
    %s161 = sphi 0, %s145
    %s167 = sphi 0, %s169
    %s170 = sphi 0, %s167
    %s171 = sphi 0, %s170
    %s187 = sphi 0, %s171
    %s199 = sphi 0, %s201
    %s202 = sphi 0, %s199
    %s203 = sphi 0, %s202
    %s219 = sphi 0, %s203
  $region4: #{tpu_custom_call.1} parent=0 // loop_header_branch
    %14 = sbr.rel (%p12) target = $region8
  $region5: #{tpu_custom_call.1} parent=0 // loop_body
    %s16 = ssub.s32 %s11, 1
    %s17 = ssub.s32 %s11, 2
    %s30 = sadd.s32 1, %s21
    %p31 = scmp.ge.s32.totalorder %s30, 1
    %s32 = scalar_select %p31, 0, %s30
    %s33 = sadd.s32 1, %s20
    %s34 = scalar_select %p31, %s33, %s20
    %p35 = scmp.ge.s32.totalorder %s34, 4
    %s36 = scalar_select %p35, 0, %s34
    %s37 = sadd.s32 1, %s19
    %s38 = scalar_select %p35, %s37, %s19
    %p39 = scmp.ge.s32.totalorder %s38, 1
    %s40 = scalar_select %p39, 0, %s38
    %s41 = sadd.s32 1, %s18
    %s42 = scalar_select %p39, %s41, %s18
    %p43 = scmp.ge.s32.totalorder %s42, 1
    %s44 = scalar_select %p43, 0, %s42
    %s45 = ssub.s32 %s19, %s40
    %s46 = ssub.s32 %s20, %s36
    %s47 = sor.u32 %s45, %s46
    %s48 = ssub.s32 %s21, %s32
    %s49 = sor.u32 %s47, %s48
    %p50 = scmp.eq.s32.totalorder %s49, 0
    %s52 = sadd.s32 %s51, 1
    %s53 = scalar_select %p50, %s51, %s52
    %p56 = pneg %p50
    %p57 = scmp.eq.s32.totalorder %s11, 3
    %p58 = por %p56, %p57
    %p59 = scmp.ne.s32.totalorder %s51, %s54
    %p60 = scmp.eq.s32.totalorder %s11, 0
    %p61 = por %p59, %p60
    %p62 = scmp.ne.s32.totalorder %s51, %s54
    %p63 = scmp.eq.s32.totalorder %s16, 3
    %p64 = por %p62, %p63
    %p65 = scmp.ne.s32.totalorder %s54, %s55
    %p66 = scmp.eq.s32.totalorder %s16, 0
    %p67 = por %p65, %p66
    %p68 = scmp.ne.s32.totalorder %s54, %s55
    %p69 = scmp.eq.s32.totalorder %s17, 3
    %p70 = por %p68, %p69
    %p72 = scmp.ne.s32.totalorder %s55, %s71
    %p73 = scmp.eq.s32.totalorder %s17, 0
    %p74 = por %p72, %p73
    %s75 = sadd.s32 %s20, 1
    %s76 = sadd.s32 %s36, 1
    %s77 = ssub.s32 %s19, %s40
    %s78 = ssub.s32 %s75, %s76
    %s79 = sor.u32 %s77, %s78
    %s80 = ssub.s32 %s21, %s32
    %s81 = sor.u32 %s79, %s80
    %p82 = scmp.eq.s32.totalorder %s81, 0
    %s84 = sadd.s32 %s83, 1
    %s85 = scalar_select %p82, %s83, %s84
    %p88 = pneg %p82
    %p89 = scmp.eq.s32.totalorder %s11, 3
    %p90 = por %p88, %p89
    %p91 = scmp.ne.s32.totalorder %s83, %s86
    %p92 = scmp.eq.s32.totalorder %s11, 0
    %p93 = por %p91, %p92
    %p94 = scmp.ne.s32.totalorder %s83, %s86
    %p95 = scmp.eq.s32.totalorder %s16, 3
    %p96 = por %p94, %p95
    %p97 = scmp.ne.s32.totalorder %s86, %s87
    %p98 = scmp.eq.s32.totalorder %s16, 0
    %p99 = por %p97, %p98
    %p100 = scmp.ne.s32.totalorder %s86, %s87
    %p101 = scmp.eq.s32.totalorder %s17, 3
    %p102 = por %p100, %p101
    %p104 = scmp.ne.s32.totalorder %s87, %s103
    %p105 = scmp.eq.s32.totalorder %s17, 0
    %p106 = por %p104, %p105
    %s107 = sadd.s32 %s20, 2
    %s108 = sadd.s32 %s36, 2
    %s109 = ssub.s32 %s19, %s40
    %s110 = ssub.s32 %s107, %s108
    %s111 = sor.u32 %s109, %s110
    %s112 = ssub.s32 %s21, %s32
    %s113 = sor.u32 %s111, %s112
    %p114 = scmp.eq.s32.totalorder %s113, 0
    %s116 = sadd.s32 %s115, 1
    %s117 = scalar_select %p114, %s115, %s116
    %p120 = pneg %p114
    %p121 = scmp.eq.s32.totalorder %s11, 3
    %p122 = por %p120, %p121
    %p123 = scmp.ne.s32.totalorder %s115, %s118
    %p124 = scmp.eq.s32.totalorder %s11, 0
    %p125 = por %p123, %p124
    %p126 = scmp.ne.s32.totalorder %s115, %s118
    %p127 = scmp.eq.s32.totalorder %s16, 3
    %p128 = por %p126, %p127
    %p129 = scmp.ne.s32.totalorder %s118, %s119
    %p130 = scmp.eq.s32.totalorder %s16, 0
    %p131 = por %p129, %p130
    %p132 = scmp.ne.s32.totalorder %s118, %s119
    %p133 = scmp.eq.s32.totalorder %s17, 3
    %p134 = por %p132, %p133
    %p136 = scmp.ne.s32.totalorder %s119, %s135
    %p137 = scmp.eq.s32.totalorder %s17, 0
    %p138 = por %p136, %p137
    %s139 = ssub.s32 %s18, %s44
    %p140 = scmp.eq.s32.totalorder %s139, 0
    %s142 = sadd.s32 %s141, 1
    %s143 = scalar_select %p140, %s141, %s142
    %p146 = pneg %p140
    %p147 = scmp.eq.s32.totalorder %s11, 3
    %p148 = por %p146, %p147
    %p149 = scmp.ne.s32.totalorder %s141, %s144
    %p150 = scmp.eq.s32.totalorder %s11, 0
    %p151 = por %p149, %p150
    %p152 = scmp.ne.s32.totalorder %s141, %s144
    %p153 = scmp.eq.s32.totalorder %s16, 3
    %p154 = por %p152, %p153
    %p155 = scmp.ne.s32.totalorder %s144, %s145
    %p156 = scmp.eq.s32.totalorder %s16, 0
    %p157 = por %p155, %p156
    %p158 = scmp.ne.s32.totalorder %s144, %s145
    %p159 = scmp.eq.s32.totalorder %s17, 3
    %p160 = por %p158, %p159
    %p162 = scmp.ne.s32.totalorder %s145, %s161
    %p163 = scmp.eq.s32.totalorder %s17, 0
    %p164 = por %p162, %p163
    %s165 = ssub.s32 %s18, %s44
    %p166 = scmp.eq.s32.totalorder %s165, 0
    %s168 = sadd.s32 %s167, 1
    %s169 = scalar_select %p166, %s167, %s168
    %p172 = pneg %p166
    %p173 = scmp.eq.s32.totalorder %s11, 3
    %p174 = por %p172, %p173
    %p175 = scmp.ne.s32.totalorder %s167, %s170
    %p176 = scmp.eq.s32.totalorder %s11, 0
    %p177 = por %p175, %p176
    %p178 = scmp.ne.s32.totalorder %s167, %s170
    %p179 = scmp.eq.s32.totalorder %s16, 3
    %p180 = por %p178, %p179
    %p181 = scmp.ne.s32.totalorder %s170, %s171
    %p182 = scmp.eq.s32.totalorder %s16, 0
    %p183 = por %p181, %p182
    %p184 = scmp.ne.s32.totalorder %s170, %s171
    %p185 = scmp.eq.s32.totalorder %s17, 3
    %p186 = por %p184, %p185
    %p188 = scmp.ne.s32.totalorder %s171, %s187
    %p189 = scmp.eq.s32.totalorder %s17, 0
    %p190 = por %p188, %p189
    %s191 = ssub.s32 %s19, %s40
    %s192 = ssub.s32 %s20, %s36
    %s193 = sor.u32 %s191, %s192
    %s194 = ssub.s32 %s21, %s32
    %s195 = sor.u32 %s193, %s194
    %s196 = ssub.s32 %s18, %s44
    %s197 = sor.u32 %s195, %s196
    %p198 = scmp.eq.s32.totalorder %s197, 0
    %s200 = sadd.s32 %s199, 1
    %s201 = scalar_select %p198, %s199, %s200
    %p204 = pneg %p198
    %p205 = scmp.eq.s32.totalorder %s11, 3
    %p206 = por %p204, %p205
    %p207 = scmp.ne.s32.totalorder %s199, %s202
    %p208 = scmp.eq.s32.totalorder %s11, 0
    %p209 = por %p207, %p208
    %p210 = scmp.ne.s32.totalorder %s199, %s202
    %p211 = scmp.eq.s32.totalorder %s16, 3
    %p212 = por %p210, %p211
    %p213 = scmp.ne.s32.totalorder %s202, %s203
    %p214 = scmp.eq.s32.totalorder %s16, 0
    %p215 = por %p213, %p214
    %p216 = scmp.ne.s32.totalorder %s202, %s203
    %p217 = scmp.eq.s32.totalorder %s17, 3
    %p218 = por %p216, %p217
    %p220 = scmp.ne.s32.totalorder %s203, %s219
    %p221 = scmp.eq.s32.totalorder %s17, 0
    %p222 = por %p220, %p221
    %p223 = scmp.le.s32.totalorder 1, %s11
    %p224 = scmp.lt.s32.totalorder %s11, 5
    %p225 = pnand %p223, %p224
    %p226 = pneg %p225
    // Predicated region
    $region9: #{tpu_custom_call.1} parent=5 // pred_check
      _
    $region10: #{tpu_custom_call.1} parent=5 // pred_check_branch
      %228 = sbr.rel (%p225) target = $region12
    $region11: #{tpu_custom_call.1} parent=5 // pred_region
      %s229 = ssub.s32 %s11, 1
      // Predicated region
      $region13: #{tpu_custom_call.1} parent=11 // pred_check
        %p230 = pneg %p157
      $region14: #{tpu_custom_call.1} parent=11 // pred_check_branch
        %232 = sbr.rel (%p230) target = $region16
      $region15: #{tpu_custom_call.1} parent=11 // pred_region
        %p233 = scmp.lt.s32.totalorder %s22, 0
        %s234 = scalar_select %p233, %s22, 0
        %s235 = smul.addr %s234, 8
        %s236 = scalar_lea.vmem %s3, %s235
      $region16: #{tpu_custom_call.1} parent=11 // pred_fallthru
        _
      // Predicated region
      $region17: #{tpu_custom_call.1} parent=11 // pred_check
        %p237 = pneg %p183
      $region18: #{tpu_custom_call.1} parent=11 // pred_check_branch
        %239 = sbr.rel (%p237) target = $region20
      $region19: #{tpu_custom_call.1} parent=11 // pred_region
        %p240 = scmp.lt.s32.totalorder %s22, 0
        %s241 = scalar_select %p240, %s22, 0
        %s242 = scalar_lea.vmem %s4, %s241
      $region20: #{tpu_custom_call.1} parent=11 // pred_fallthru
        _
    $region12: #{tpu_custom_call.1} parent=5 // pred_fallthru
      _
    %p243 = scmp.lt.s32.totalorder %s11, 4
    // Predicated region
    $region21: #{tpu_custom_call.1} parent=5 // pred_check
      %p244 = pneg %p243
    $region22: #{tpu_custom_call.1} parent=5 // pred_check_branch
      %246 = sbr.rel (%p244) target = $region24
    $region23: #{tpu_custom_call.1} parent=5 // pred_region
      // Predicated region
      $region25: #{tpu_custom_call.1} parent=23 // pred_check
        %p247 = pneg %p61
      $region26: #{tpu_custom_call.1} parent=23 // pred_check_branch
        %249 = sbr.rel (%p247) target = $region28
      $region27: #{tpu_custom_call.1} parent=23 // pred_region
        %p250 = scmp.lt.s32.totalorder %s19, 0
        %s251 = scalar_select %p250, %s19, 0
        %p252 = scmp.lt.s32.totalorder %s20, 5
        %s253 = scalar_select %p252, %s20, 5
        %p254 = scmp.lt.s32.totalorder %s21, 0
        %s255 = scalar_select %p254, %s21, 0
        %s256 = smul.addr %s255, 8
        %s257 = smul.addr %s253, 8
        %s258 = sadd.s32 %s256, %s257
        %s259 = smul.addr %s251, 48
        %s260 = sadd.s32 %s258, %s259
        %s261 = smul.addr %s260, 8
        %s262 = scalar_lea.vmem %s0, %s261
      $region28: #{tpu_custom_call.1} parent=23 // pred_fallthru
        _
      // Predicated region
      $region29: #{tpu_custom_call.1} parent=23 // pred_check
        %p263 = pneg %p93
      $region30: #{tpu_custom_call.1} parent=23 // pred_check_branch
        %265 = sbr.rel (%p263) target = $region32
      $region31: #{tpu_custom_call.1} parent=23 // pred_region
        %s266 = sadd.s32 %s20, 1
        %p267 = scmp.lt.s32.totalorder %s19, 0
        %s268 = scalar_select %p267, %s19, 0
        %p269 = scmp.lt.s32.totalorder %s266, 5
        %s270 = scalar_select %p269, %s266, 5
        %p271 = scmp.lt.s32.totalorder %s21, 0
        %s272 = scalar_select %p271, %s21, 0
        %s273 = smul.addr %s272, 8
        %s274 = smul.addr %s270, 8
        %s275 = sadd.s32 %s273, %s274
        %s276 = smul.addr %s268, 48
        %s277 = sadd.s32 %s275, %s276
        %s278 = smul.addr %s277, 8
        %s279 = scalar_lea.vmem %s1, %s278
        %s280 = sadd.s32 %s20, 1
      $region32: #{tpu_custom_call.1} parent=23 // pred_fallthru
        _
      // Predicated region
      $region33: #{tpu_custom_call.1} parent=23 // pred_check
        %p281 = pneg %p125
      $region34: #{tpu_custom_call.1} parent=23 // pred_check_branch
        %283 = sbr.rel (%p281) target = $region36
      $region35: #{tpu_custom_call.1} parent=23 // pred_region
        %s284 = sadd.s32 %s20, 2
        %p285 = scmp.lt.s32.totalorder %s19, 0
        %s286 = scalar_select %p285, %s19, 0
        %p287 = scmp.lt.s32.totalorder %s284, 5
        %s288 = scalar_select %p287, %s284, 5
        %p289 = scmp.lt.s32.totalorder %s21, 0
        %s290 = scalar_select %p289, %s21, 0
        %s291 = smul.addr %s290, 8
        %s292 = smul.addr %s288, 8
        %s293 = sadd.s32 %s291, %s292
        %s294 = smul.addr %s286, 48
        %s295 = sadd.s32 %s293, %s294
        %s296 = smul.addr %s295, 8
        %s297 = scalar_lea.vmem %s2, %s296
        %s298 = sadd.s32 %s20, 2
      $region36: #{tpu_custom_call.1} parent=23 // pred_fallthru
        _
    $region24: #{tpu_custom_call.1} parent=5 // pred_fallthru
      _
    %p299 = scmp.le.s32.totalorder 1, %s11
    %p300 = scmp.lt.s32.totalorder %s11, 5
    %p301 = pnand %p299, %p300
    %p302 = pneg %p301
    // Predicated region
    $region37: #{tpu_custom_call.1} parent=5 // pred_check
      _
    $region38: #{tpu_custom_call.1} parent=5 // pred_check_branch
      %304 = sbr.rel (%p301) target = $region40
    $region39: #{tpu_custom_call.1} parent=5 // pred_region
      %s305 = ssub.s32 %s11, 1
      %p306 = scmp.lt.s32.totalorder %s23, 0
      %s307 = scalar_select %p306, %s23, 0
      %p308 = scmp.lt.s32.totalorder %s24, 5
      %s309 = scalar_select %p308, %s24, 5
      %p310 = scmp.lt.s32.totalorder %s25, 0
      %s311 = scalar_select %p310, %s25, 0
      %s312 = smul.addr %s311, 8
      %s313 = smul.addr %s309, 8
      %s314 = sadd.s32 %s312, %s313
      %s315 = smul.addr %s307, 48
      %s316 = sadd.s32 %s314, %s315
      %s317 = smul.addr %s316, 8
      %s318 = scalar_lea.vmem %s0, %s317
      %p319 = pneg %p67
      %p320 = pneg %p64
      %s321 = sadd.s32 %s24, 1
      %p322 = scmp.lt.s32.totalorder %s23, 0
      %s323 = scalar_select %p322, %s23, 0
      %p324 = scmp.lt.s32.totalorder %s321, 5
      %s325 = scalar_select %p324, %s321, 5
      %p326 = scmp.lt.s32.totalorder %s25, 0
      %s327 = scalar_select %p326, %s25, 0
      %s328 = smul.addr %s327, 8
      %s329 = smul.addr %s325, 8
      %s330 = sadd.s32 %s328, %s329
      %s331 = smul.addr %s323, 48
      %s332 = sadd.s32 %s330, %s331
      %s333 = smul.addr %s332, 8
      %s334 = scalar_lea.vmem %s1, %s333
      %p335 = pneg %p99
      %p336 = pneg %p96
      %s337 = sadd.s32 %s24, 2
      %p338 = scmp.lt.s32.totalorder %s23, 0
      %s339 = scalar_select %p338, %s23, 0
      %p340 = scmp.lt.s32.totalorder %s337, 5
      %s341 = scalar_select %p340, %s337, 5
      %p342 = scmp.lt.s32.totalorder %s25, 0
      %s343 = scalar_select %p342, %s25, 0
      %s344 = smul.addr %s343, 8
      %s345 = smul.addr %s341, 8
      %s346 = sadd.s32 %s344, %s345
      %s347 = smul.addr %s339, 48
      %s348 = sadd.s32 %s346, %s347
      %s349 = smul.addr %s348, 8
      %s350 = scalar_lea.vmem %s2, %s349
      %p351 = pneg %p131
      %p352 = pneg %p128
      %p353 = scmp.lt.s32.totalorder %s22, 0
      %s354 = scalar_select %p353, %s22, 0
      %s355 = smul.addr %s354, 8
      %s356 = scalar_lea.vmem %s3, %s355
      %p357 = pneg %p157
      %p358 = pneg %p154
      %p359 = scmp.lt.s32.totalorder %s22, 0
      %s360 = scalar_select %p359, %s22, 0
      %s361 = scalar_lea.vmem %s4, %s360
      %p362 = pneg %p183
      %p363 = pneg %p180
      %p364 = pneg %p215
      %p365 = pneg %p212
      %p366 = scmp.lt.s32.totalorder %s23, 0
      %s367 = scalar_select %p366, %s23, 0
      %p368 = scmp.lt.s32.totalorder %s24, 3
      %s369 = scalar_select %p368, %s24, 3
      %p370 = scmp.lt.s32.totalorder %s25, 0
      %s371 = scalar_select %p370, %s25, 0
      %p372 = scmp.lt.s32.totalorder %s22, 0
      %s373 = scalar_select %p372, %s22, 0
      %s374 = smul.addr %s371, 8
      %s375 = sadd.s32 %s373, %s374
      %s376 = smul.addr %s369, 8
      %s377 = sadd.s32 %s375, %s376
      %s378 = smul.addr %s367, 32
      %s379 = sadd.s32 %s377, %s378
      %s380 = smul.addr %s379, 8
      %s381 = scalar_lea.vmem %s5, %s380
      %p382 = scmp.lt.s32.totalorder %s23, 0
      %s383 = scalar_select %p382, %s23, 0
      %p384 = scmp.lt.s32.totalorder %s24, 5
      %s385 = scalar_select %p384, %s24, 5
      %p386 = scmp.lt.s32.totalorder %s25, 0
      %s387 = scalar_select %p386, %s25, 0
      %s388 = smul.addr %s387, 8
      %s389 = smul.addr %s385, 8
      %s390 = sadd.s32 %s388, %s389
      %s391 = smul.addr %s383, 48
      %s392 = sadd.s32 %s390, %s391
      %s393 = smul.addr %s392, 8
      %s394 = scalar_lea.vmem %s0, %s393
      %s395 = sadd.s32 %s24, 1
      %p396 = scmp.lt.s32.totalorder %s23, 0
      %s397 = scalar_select %p396, %s23, 0
      %p398 = scmp.lt.s32.totalorder %s395, 5
      %s399 = scalar_select %p398, %s395, 5
      %p400 = scmp.lt.s32.totalorder %s25, 0
      %s401 = scalar_select %p400, %s25, 0
      %s402 = smul.addr %s401, 8
      %s403 = smul.addr %s399, 8
      %s404 = sadd.s32 %s402, %s403
      %s405 = smul.addr %s397, 48
      %s406 = sadd.s32 %s404, %s405
      %s407 = smul.addr %s406, 8
      %s408 = scalar_lea.vmem %s1, %s407
      %s409 = sadd.s32 %s24, 1
      %s410 = sadd.s32 %s24, 2
      %p411 = scmp.lt.s32.totalorder %s23, 0
      %s412 = scalar_select %p411, %s23, 0
      %p413 = scmp.lt.s32.totalorder %s410, 5
      %s414 = scalar_select %p413, %s410, 5
      %p415 = scmp.lt.s32.totalorder %s25, 0
      %s416 = scalar_select %p415, %s25, 0
      %s417 = smul.addr %s416, 8
      %s418 = smul.addr %s414, 8
      %s419 = sadd.s32 %s417, %s418
      %s420 = smul.addr %s412, 48
      %s421 = sadd.s32 %s419, %s420
      %s422 = smul.addr %s421, 8
      %s423 = scalar_lea.vmem %s2, %s422
      %s424 = sadd.s32 %s24, 2
      %p425 = scmp.lt.s32.totalorder %s22, 0
      %s426 = scalar_select %p425, %s22, 0
      %s427 = smul.addr %s426, 8
      %s428 = scalar_lea.vmem %s3, %s427
      %p429 = scmp.lt.s32.totalorder %s22, 0
      %s430 = scalar_select %p429, %s22, 0
      %s431 = scalar_lea.vmem %s4, %s430
      %p432 = scmp.lt.s32.totalorder %s23, 0
      %s433 = scalar_select %p432, %s23, 0
      %p434 = scmp.lt.s32.totalorder %s24, 3
      %s435 = scalar_select %p434, %s24, 3
      %p436 = scmp.lt.s32.totalorder %s25, 0
      %s437 = scalar_select %p436, %s25, 0
      %p438 = scmp.lt.s32.totalorder %s22, 0
      %s439 = scalar_select %p438, %s22, 0
      %s440 = smul.addr %s437, 8
      %s441 = sadd.s32 %s439, %s440
      %s442 = smul.addr %s435, 8
      %s443 = sadd.s32 %s441, %s442
      %s444 = smul.addr %s433, 32
      %s445 = sadd.s32 %s443, %s444
      %s446 = smul.addr %s445, 8
      %s447 = scalar_lea.vmem %s5, %s446
      %v448 = vld [vmem:[%s431] sm:$0x1]
      %v449 = vld [vmem:[%s394] sm:$0xff]
      %v450 = vld [vmem:[%s394 + $0x8] sm:$0xff]
      %v451 = vld [vmem:[%s394 + $0x10] sm:$0xff]
      %v452 = vld [vmem:[%s394 + $0x18] sm:$0xff]
      %v453 = vld [vmem:[%s394 + $0x20] sm:$0xff]
      %v454 = vld [vmem:[%s394 + $0x28] sm:$0xff]
      %v455 = vld [vmem:[%s394 + $0x30] sm:$0xff]
      %v456 = vld [vmem:[%s394 + $0x38] sm:$0xff]
      %v457 = vld [vmem:[%s428] sm:$0xff]
      %v458 = vld [vmem:[%s428 + $0x8] sm:$0xff]
      %v459 = vld [vmem:[%s428 + $0x10] sm:$0xff]
      %v460 = vld [vmem:[%s428 + $0x18] sm:$0x7]
      %v461 = vld [vmem:[%s408] sm:$0xff]
      %v462 = vld [vmem:[%s408 + $0x8] sm:$0xff]
      %v463 = vld [vmem:[%s408 + $0x10] sm:$0xff]
      %v464 = vld [vmem:[%s408 + $0x18] sm:$0xff]
      %v465 = vld [vmem:[%s408 + $0x20] sm:$0xff]
      %v466 = vld [vmem:[%s408 + $0x28] sm:$0xff]
      %v467 = vld [vmem:[%s408 + $0x30] sm:$0xff]
      %v468 = vld [vmem:[%s408 + $0x38] sm:$0xff]
      %s469 = scalar_lea.vmem %s428, 32
      %v470 = vld [vmem:[%s469] sm:$0xff]
      %v471 = vld [vmem:[%s469 + $0x8] sm:$0xff]
      %v472 = vld [vmem:[%s469 + $0x10] sm:$0xff]
      %v473 = vld [vmem:[%s469 + $0x18] sm:$0x7]
      %vm474 = vcmask 220160
      %v476 = vsel %vm474, %v461, 0
      %v479 = vsel %vm474, %v462, 0
      %v482 = vsel %vm474, %v463, 0
      %v485 = vsel %vm474, %v464, 0
      %v488 = vsel %vm474, %v465, 0
      %v491 = vsel %vm474, %v466, 0
      %v494 = vsel %vm474, %v467, 0
      %v497 = vsel %vm474, %v468, 0
      %vm499 = vcmask 1042432
      %v501 = vsel %vm499, %v473, 0
      %503 = vmatprep.subr.mxu0 0.0
      %504 = vmatpush1.msra.mxu0 0.0
      %505 = vmatprep.subr.mxu0 0.0
      %506 = vmatpush1.msra.mxu0 0.0
      %507 = vmatprep.subr.mxu0 0.0
      %508 = vmatpush1.msra.mxu0 0.0
      %509 = vmatprep.subr.mxu0 0.0
      %510 = vmatpush1.msra.mxu0 0.0
      %511 = vmatprep.subr.mxu0 0.0
      %512 = vmatpush1.msra.mxu0 0.0
      %513 = vmatprep.subr.mxu0 0.0
      %514 = vmatpush1.msra.mxu0 0.0
      %515 = vmatprep.subr.mxu0 0.0
      %516 = vmatpush1.msra.mxu0 0.0
      %517 = vmatprep.subr.mxu0 0.0
      %518 = vmatpush1.msra.mxu0 0.0
      %519 = vmatprep.subr.mxu0 0.0
      %520 = vmatpush1.msra.mxu0 0.0
      %521 = vmatprep.subr.mxu0 0.0
      %522 = vmatpush1.msra.mxu0 0.0
      %523 = vmatprep.subr.mxu0 0.0
      %524 = vmatpush1.msra.mxu0 0.0
      %525 = vmatprep.subr.mxu0 0.0
      %526 = vmatpush1.msra.mxu0 0.0
      %527 = vmatprep.subr.mxu0 0.0
      %528 = vmatpush1.msra.mxu0 %v501
      %529 = vmatprep.subr.mxu0 0.0
      %530 = vmatpush1.msra.mxu0 %v472
      %531 = vmatprep.subr.mxu0 0.0
      %532 = vmatpush1.msra.mxu0 %v471
      %533 = vmatprep.subr.mxu0 0.0
      %534 = vmatpush1.msra.mxu0 %v470
      %535 = vmatprep.subr.mxu0 0.0
      %536 = vmatpush2.msra.mxu0 0.0
      %537 = vmatprep.subr.mxu0 0.0
      %538 = vmatpush2.msra.mxu0 0.0
      %539 = vmatprep.subr.mxu0 0.0
      %540 = vmatpush2.msra.mxu0 0.0
      %541 = vmatprep.subr.mxu0 0.0
      %542 = vmatpush2.msra.mxu0 0.0
      %543 = vmatprep.subr.mxu0 0.0
      %544 = vmatpush2.msra.mxu0 0.0
      %545 = vmatprep.subr.mxu0 0.0
      %546 = vmatpush2.msra.mxu0 0.0
      %547 = vmatprep.subr.mxu0 0.0
      %548 = vmatpush2.msra.mxu0 0.0
      %549 = vmatprep.subr.mxu0 0.0
      %550 = vmatpush2.msra.mxu0 0.0
      %551 = vmatprep.subr.mxu0 0.0
      %552 = vmatpush2.msra.mxu0 0.0
      %553 = vmatprep.subr.mxu0 0.0
      %554 = vmatpush2.msra.mxu0 0.0
      %555 = vmatprep.subr.mxu0 0.0
      %556 = vmatpush2.msra.mxu0 0.0
      %557 = vmatprep.subr.mxu0 0.0
      %558 = vmatpush2.msra.mxu0 0.0
      %559 = vmatprep.subr.mxu0 0.0
      %560 = vmatpush2.msra.mxu0 0.0
      %561 = vmatprep.subr.mxu0 0.0
      %562 = vmatpush2.msra.mxu0 0.0
      %563 = vmatprep.subr.mxu0 0.0
      %564 = vmatpush2.msra.mxu0 0.0
      %565 = vmatprep.subr.mxu0 0.0
      %566 = vmatpush2.msra.mxu0 0.0
      %567 = vmatprep.mubr.f32.mxu0 0.0
      %568 = vmatmul.mubr.f32.gmra.mxu0 %v476
      %v569 = vpop.f32.mrf.mxu0
      %v570 = vadd.f32 0.0, %v569
      %v571 = vpop.f32.mrf.mxu0
      %572 = vmatprep.mubr.f32.mxu0 0.0
      %573 = vmatmul.mubr.f32.gmra.mxu0 %v479
      %v574 = vpop.f32.mrf.mxu0
      %v575 = vadd.f32 0.0, %v574
      %v576 = vpop.f32.mrf.mxu0
      %577 = vmatprep.mubr.f32.mxu0 0.0
      %578 = vmatmul.mubr.f32.gmra.mxu0 %v482
      %v579 = vpop.f32.mrf.mxu0
      %v580 = vadd.f32 0.0, %v579
      %v581 = vpop.f32.mrf.mxu0
      %582 = vmatprep.mubr.f32.mxu0 0.0
      %583 = vmatmul.mubr.f32.gmra.mxu0 %v485
      %v584 = vpop.f32.mrf.mxu0
      %v585 = vadd.f32 0.0, %v584
      %v586 = vpop.f32.mrf.mxu0
      %587 = vmatprep.mubr.f32.mxu0 0.0
      %588 = vmatmul.mubr.f32.gmra.mxu0 %v488
      %v589 = vpop.f32.mrf.mxu0
      %v590 = vadd.f32 0.0, %v589
      %v591 = vpop.f32.mrf.mxu0
      %592 = vmatprep.mubr.f32.mxu0 0.0
      %593 = vmatmul.mubr.f32.gmra.mxu0 %v491
      %v594 = vpop.f32.mrf.mxu0
      %v595 = vadd.f32 0.0, %v594
      %v596 = vpop.f32.mrf.mxu0
      %597 = vmatprep.mubr.f32.mxu0 0.0
      %598 = vmatmul.mubr.f32.gmra.mxu0 %v494
      %v599 = vpop.f32.mrf.mxu0
      %v600 = vadd.f32 0.0, %v599
      %v601 = vpop.f32.mrf.mxu0
      %602 = vmatprep.mubr.f32.mxu0 0.0
      %603 = vmatmul.mubr.f32.gmra.mxu0 %v497
      %v604 = vpop.f32.mrf.mxu0
      %v605 = vadd.f32 0.0, %v604
      %v606 = vpop.f32.mrf.mxu0
      %607 = vdwg.mxu0
      %v609 = vsel %vm474, %v449, 0
      %v612 = vsel %vm474, %v450, 0
      %v615 = vsel %vm474, %v451, 0
      %v618 = vsel %vm474, %v452, 0
      %v621 = vsel %vm474, %v453, 0
      %v624 = vsel %vm474, %v454, 0
      %v627 = vsel %vm474, %v455, 0
      %v630 = vsel %vm474, %v456, 0
      %v633 = vsel %vm499, %v460, 0
      %635 = vmatprep.subr.mxu0 0.0
      %636 = vmatpush1.msra.mxu0 0.0
      %637 = vmatprep.subr.mxu0 0.0
      %638 = vmatpush1.msra.mxu0 0.0
      %639 = vmatprep.subr.mxu0 0.0
      %640 = vmatpush1.msra.mxu0 0.0
      %641 = vmatprep.subr.mxu0 0.0
      %642 = vmatpush1.msra.mxu0 0.0
      %643 = vmatprep.subr.mxu0 0.0
      %644 = vmatpush1.msra.mxu0 0.0
      %645 = vmatprep.subr.mxu0 0.0
      %646 = vmatpush1.msra.mxu0 0.0
      %647 = vmatprep.subr.mxu0 0.0
      %648 = vmatpush1.msra.mxu0 0.0
      %649 = vmatprep.subr.mxu0 0.0
      %650 = vmatpush1.msra.mxu0 0.0
      %651 = vmatprep.subr.mxu0 0.0
      %652 = vmatpush1.msra.mxu0 0.0
      %653 = vmatprep.subr.mxu0 0.0
      %654 = vmatpush1.msra.mxu0 0.0
      %655 = vmatprep.subr.mxu0 0.0
      %656 = vmatpush1.msra.mxu0 0.0
      %657 = vmatprep.subr.mxu0 0.0
      %658 = vmatpush1.msra.mxu0 0.0
      %659 = vmatprep.subr.mxu0 0.0
      %660 = vmatpush1.msra.mxu0 %v633
      %661 = vmatprep.subr.mxu0 0.0
      %662 = vmatpush1.msra.mxu0 %v459
      %663 = vmatprep.subr.mxu0 0.0
      %664 = vmatpush1.msra.mxu0 %v458
      %665 = vmatprep.subr.mxu0 0.0
      %666 = vmatpush1.msra.mxu0 %v457
      %667 = vmatprep.subr.mxu0 0.0
      %668 = vmatpush2.msra.mxu0 0.0
      %669 = vmatprep.subr.mxu0 0.0
      %670 = vmatpush2.msra.mxu0 0.0
      %671 = vmatprep.subr.mxu0 0.0
      %672 = vmatpush2.msra.mxu0 0.0
      %673 = vmatprep.subr.mxu0 0.0
      %674 = vmatpush2.msra.mxu0 0.0
      %675 = vmatprep.subr.mxu0 0.0
      %676 = vmatpush2.msra.mxu0 0.0
      %677 = vmatprep.subr.mxu0 0.0
      %678 = vmatpush2.msra.mxu0 0.0
      %679 = vmatprep.subr.mxu0 0.0
      %680 = vmatpush2.msra.mxu0 0.0
      %681 = vmatprep.subr.mxu0 0.0
      %682 = vmatpush2.msra.mxu0 0.0
      %683 = vmatprep.subr.mxu0 0.0
      %684 = vmatpush2.msra.mxu0 0.0
      %685 = vmatprep.subr.mxu0 0.0
      %686 = vmatpush2.msra.mxu0 0.0
      %687 = vmatprep.subr.mxu0 0.0
      %688 = vmatpush2.msra.mxu0 0.0
      %689 = vmatprep.subr.mxu0 0.0
      %690 = vmatpush2.msra.mxu0 0.0
      %691 = vmatprep.subr.mxu0 0.0
      %692 = vmatpush2.msra.mxu0 0.0
      %693 = vmatprep.subr.mxu0 0.0
      %694 = vmatpush2.msra.mxu0 0.0
      %695 = vmatprep.subr.mxu0 0.0
      %696 = vmatpush2.msra.mxu0 0.0
      %697 = vmatprep.subr.mxu0 0.0
      %698 = vmatpush2.msra.mxu0 0.0
      %699 = vmatprep.mubr.f32.mxu0 0.0
      %700 = vmatmul.mubr.f32.gmra.mxu0 %v609
      %v701 = vpop.f32.mrf.mxu0
      %v702 = vadd.f32 %v570, %v701
      %v703 = vpop.f32.mrf.mxu0
      %704 = vmatprep.mubr.f32.mxu0 0.0
      %705 = vmatmul.mubr.f32.gmra.mxu0 %v612
      %v706 = vpop.f32.mrf.mxu0
      %v707 = vadd.f32 %v575, %v706
      %v708 = vpop.f32.mrf.mxu0
      %709 = vmatprep.mubr.f32.mxu0 0.0
      %710 = vmatmul.mubr.f32.gmra.mxu0 %v615
      %v711 = vpop.f32.mrf.mxu0
      %v712 = vadd.f32 %v580, %v711
      %v713 = vpop.f32.mrf.mxu0
      %714 = vmatprep.mubr.f32.mxu0 0.0
      %715 = vmatmul.mubr.f32.gmra.mxu0 %v618
      %v716 = vpop.f32.mrf.mxu0
      %v717 = vadd.f32 %v585, %v716
      %v718 = vpop.f32.mrf.mxu0
      %719 = vmatprep.mubr.f32.mxu0 0.0
      %720 = vmatmul.mubr.f32.gmra.mxu0 %v621
      %v721 = vpop.f32.mrf.mxu0
      %v722 = vadd.f32 %v590, %v721
      %v723 = vpop.f32.mrf.mxu0
      %724 = vmatprep.mubr.f32.mxu0 0.0
      %725 = vmatmul.mubr.f32.gmra.mxu0 %v624
      %v726 = vpop.f32.mrf.mxu0
      %v727 = vadd.f32 %v595, %v726
      %v728 = vpop.f32.mrf.mxu0
      %729 = vmatprep.mubr.f32.mxu0 0.0
      %730 = vmatmul.mubr.f32.gmra.mxu0 %v627
      %v731 = vpop.f32.mrf.mxu0
      %v732 = vadd.f32 %v600, %v731
      %v733 = vpop.f32.mrf.mxu0
      %734 = vmatprep.mubr.f32.mxu0 0.0
      %735 = vmatmul.mubr.f32.gmra.mxu0 %v630
      %v736 = vpop.f32.mrf.mxu0
      %v737 = vadd.f32 %v605, %v736
      %v738 = vpop.f32.mrf.mxu0
      %739 = vdwg.mxu0
      %v740 = vld [vmem:[%s423] sm:$0xff]
      %v741 = vld [vmem:[%s423 + $0x8] sm:$0xff]
      %v742 = vld [vmem:[%s423 + $0x10] sm:$0xff]
      %v743 = vld [vmem:[%s423 + $0x18] sm:$0xff]
      %v744 = vld [vmem:[%s423 + $0x20] sm:$0xff]
      %v745 = vld [vmem:[%s423 + $0x28] sm:$0xff]
      %v746 = vld [vmem:[%s423 + $0x30] sm:$0xff]
      %v747 = vld [vmem:[%s423 + $0x38] sm:$0xff]
      %s748 = scalar_lea.vmem %s428, 64
      %v749 = vld [vmem:[%s748] sm:$0xff]
      %v750 = vld [vmem:[%s748 + $0x8] sm:$0xff]
      %v751 = vld [vmem:[%s748 + $0x10] sm:$0xff]
      %v752 = vld [vmem:[%s748 + $0x18] sm:$0x7]
      %v754 = vsel %vm474, %v740, 0
      %v757 = vsel %vm474, %v741, 0
      %v760 = vsel %vm474, %v742, 0
      %v763 = vsel %vm474, %v743, 0
      %v766 = vsel %vm474, %v744, 0
      %v769 = vsel %vm474, %v745, 0
      %v772 = vsel %vm474, %v746, 0
      %v775 = vsel %vm474, %v747, 0
      %v778 = vsel %vm499, %v752, 0
      %780 = vmatprep.subr.mxu0 0.0
      %781 = vmatpush1.msra.mxu0 0.0
      %782 = vmatprep.subr.mxu0 0.0
      %783 = vmatpush1.msra.mxu0 0.0
      %784 = vmatprep.subr.mxu0 0.0
      %785 = vmatpush1.msra.mxu0 0.0
      %786 = vmatprep.subr.mxu0 0.0
      %787 = vmatpush1.msra.mxu0 0.0
      %788 = vmatprep.subr.mxu0 0.0
      %789 = vmatpush1.msra.mxu0 0.0
      %790 = vmatprep.subr.mxu0 0.0
      %791 = vmatpush1.msra.mxu0 0.0
      %792 = vmatprep.subr.mxu0 0.0
      %793 = vmatpush1.msra.mxu0 0.0
      %794 = vmatprep.subr.mxu0 0.0
      %795 = vmatpush1.msra.mxu0 0.0
      %796 = vmatprep.subr.mxu0 0.0
      %797 = vmatpush1.msra.mxu0 0.0
      %798 = vmatprep.subr.mxu0 0.0
      %799 = vmatpush1.msra.mxu0 0.0
      %800 = vmatprep.subr.mxu0 0.0
      %801 = vmatpush1.msra.mxu0 0.0
      %802 = vmatprep.subr.mxu0 0.0
      %803 = vmatpush1.msra.mxu0 0.0
      %804 = vmatprep.subr.mxu0 0.0
      %805 = vmatpush1.msra.mxu0 %v778
      %806 = vmatprep.subr.mxu0 0.0
      %807 = vmatpush1.msra.mxu0 %v751
      %808 = vmatprep.subr.mxu0 0.0
      %809 = vmatpush1.msra.mxu0 %v750
      %810 = vmatprep.subr.mxu0 0.0
      %811 = vmatpush1.msra.mxu0 %v749
      %812 = vmatprep.subr.mxu0 0.0
      %813 = vmatpush2.msra.mxu0 0.0
      %814 = vmatprep.subr.mxu0 0.0
      %815 = vmatpush2.msra.mxu0 0.0
      %816 = vmatprep.subr.mxu0 0.0
      %817 = vmatpush2.msra.mxu0 0.0
      %818 = vmatprep.subr.mxu0 0.0
      %819 = vmatpush2.msra.mxu0 0.0
      %820 = vmatprep.subr.mxu0 0.0
      %821 = vmatpush2.msra.mxu0 0.0
      %822 = vmatprep.subr.mxu0 0.0
      %823 = vmatpush2.msra.mxu0 0.0
      %824 = vmatprep.subr.mxu0 0.0
      %825 = vmatpush2.msra.mxu0 0.0
      %826 = vmatprep.subr.mxu0 0.0
      %827 = vmatpush2.msra.mxu0 0.0
      %828 = vmatprep.subr.mxu0 0.0
      %829 = vmatpush2.msra.mxu0 0.0
      %830 = vmatprep.subr.mxu0 0.0
      %831 = vmatpush2.msra.mxu0 0.0
      %832 = vmatprep.subr.mxu0 0.0
      %833 = vmatpush2.msra.mxu0 0.0
      %834 = vmatprep.subr.mxu0 0.0
      %835 = vmatpush2.msra.mxu0 0.0
      %836 = vmatprep.subr.mxu0 0.0
      %837 = vmatpush2.msra.mxu0 0.0
      %838 = vmatprep.subr.mxu0 0.0
      %839 = vmatpush2.msra.mxu0 0.0
      %840 = vmatprep.subr.mxu0 0.0
      %841 = vmatpush2.msra.mxu0 0.0
      %842 = vmatprep.subr.mxu0 0.0
      %843 = vmatpush2.msra.mxu0 0.0
      %844 = vmatprep.mubr.f32.mxu0 0.0
      %845 = vmatmul.mubr.f32.gmra.mxu0 %v754
      %v846 = vpop.f32.mrf.mxu0
      %v847 = vadd.f32 0.0, %v846
      %v848 = vpop.f32.mrf.mxu0
      %849 = vmatprep.mubr.f32.mxu0 0.0
      %850 = vmatmul.mubr.f32.gmra.mxu0 %v757
      %v851 = vpop.f32.mrf.mxu0
      %v852 = vadd.f32 0.0, %v851
      %v853 = vpop.f32.mrf.mxu0
      %854 = vmatprep.mubr.f32.mxu0 0.0
      %855 = vmatmul.mubr.f32.gmra.mxu0 %v760
      %v856 = vpop.f32.mrf.mxu0
      %v857 = vadd.f32 0.0, %v856
      %v858 = vpop.f32.mrf.mxu0
      %859 = vmatprep.mubr.f32.mxu0 0.0
      %860 = vmatmul.mubr.f32.gmra.mxu0 %v763
      %v861 = vpop.f32.mrf.mxu0
      %v862 = vadd.f32 0.0, %v861
      %v863 = vpop.f32.mrf.mxu0
      %864 = vmatprep.mubr.f32.mxu0 0.0
      %865 = vmatmul.mubr.f32.gmra.mxu0 %v766
      %v866 = vpop.f32.mrf.mxu0
      %v867 = vadd.f32 0.0, %v866
      %v868 = vpop.f32.mrf.mxu0
      %869 = vmatprep.mubr.f32.mxu0 0.0
      %870 = vmatmul.mubr.f32.gmra.mxu0 %v769
      %v871 = vpop.f32.mrf.mxu0
      %v872 = vadd.f32 0.0, %v871
      %v873 = vpop.f32.mrf.mxu0
      %874 = vmatprep.mubr.f32.mxu0 0.0
      %875 = vmatmul.mubr.f32.gmra.mxu0 %v772
      %v876 = vpop.f32.mrf.mxu0
      %v877 = vadd.f32 0.0, %v876
      %v878 = vpop.f32.mrf.mxu0
      %879 = vmatprep.mubr.f32.mxu0 0.0
      %880 = vmatmul.mubr.f32.gmra.mxu0 %v775
      %v881 = vpop.f32.mrf.mxu0
      %v882 = vadd.f32 0.0, %v881
      %v883 = vpop.f32.mrf.mxu0
      %884 = vdwg.mxu0
      %v885 = vadd.f32 %v702, %v847
      %v886 = vadd.f32 %v707, %v852
      %v887 = vadd.f32 %v712, %v857
      %v888 = vadd.f32 %v717, %v862
      %v889 = vadd.f32 %v722, %v867
      %v890 = vadd.f32 %v727, %v872
      %v891 = vadd.f32 %v732, %v877
      %v892 = vadd.f32 %v737, %v882
      %v894 = vlaneseq
      %v895 = vshrl.u32 %v894, 7
      %v896 = vsub.s32 0, %v895
      %v897 = vrot.slane %v448, %v896
      %v899 = vadd.f32 %v885, %v897
      %v900 = vadd.f32 %v886, %v897
      %v901 = vadd.f32 %v887, %v897
      %v902 = vadd.f32 %v888, %v897
      %v903 = vadd.f32 %v889, %v897
      %v904 = vadd.f32 %v890, %v897
      %v905 = vadd.f32 %v891, %v897
      %v906 = vadd.f32 %v892, %v897
      %v907 = vmax.f32 %v899, 0.0
      %v908 = vmax.f32 %v900, 0.0
      %v909 = vmax.f32 %v901, 0.0
      %v910 = vmax.f32 %v902, 0.0
      %v911 = vmax.f32 %v903, 0.0
      %v912 = vmax.f32 %v904, 0.0
      %v913 = vmax.f32 %v905, 0.0
      %v914 = vmax.f32 %v906, 0.0
      %vm915 = vcmask 130048
      %916 = vst.msk [vmem:[%s447] sm:$0xff] %vm915, %v907
      %917 = vst.msk [vmem:[%s447 + $0x8] sm:$0xff] %vm915, %v908
      %918 = vst.msk [vmem:[%s447 + $0x10] sm:$0xff] %vm915, %v909
      %919 = vst.msk [vmem:[%s447 + $0x18] sm:$0xff] %vm915, %v910
      %920 = vst.msk [vmem:[%s447 + $0x20] sm:$0xff] %vm915, %v911
      %921 = vst.msk [vmem:[%s447 + $0x28] sm:$0xff] %vm915, %v912
      %922 = vst.msk [vmem:[%s447 + $0x30] sm:$0xff] %vm915, %v913
      %923 = vst.msk [vmem:[%s447 + $0x38] sm:$0xff] %vm915, %v914
      %p924 = scmp.lt.s32.totalorder %s23, 0
      %s925 = scalar_select %p924, %s23, 0
      %p926 = scmp.lt.s32.totalorder %s24, 3
      %s927 = scalar_select %p926, %s24, 3
      %p928 = scmp.lt.s32.totalorder %s25, 0
      %s929 = scalar_select %p928, %s25, 0
      %p930 = scmp.lt.s32.totalorder %s22, 0
      %s931 = scalar_select %p930, %s22, 0
      %s932 = smul.addr %s929, 8
      %s933 = sadd.s32 %s931, %s932
      %s934 = smul.addr %s927, 8
      %s935 = sadd.s32 %s933, %s934
      %s936 = smul.addr %s925, 32
      %s937 = sadd.s32 %s935, %s936
      %s938 = smul.addr %s937, 8
      %s939 = scalar_lea.vmem %s5, %s938
      // Predicated region
      $region41: #{tpu_custom_call.1} parent=39 // pred_check
        %p940 = pneg %p212
      $region42: #{tpu_custom_call.1} parent=39 // pred_check_branch
        %942 = sbr.rel (%p940) target = $region44
      $region43: #{tpu_custom_call.1} parent=39 // pred_region
        _
      $region44: #{tpu_custom_call.1} parent=39 // pred_fallthru
        _
    $region40: #{tpu_custom_call.1} parent=5 // pred_fallthru
      _
    %p943 = scmp.le.s32.totalorder 2, %s11
    // Predicated region
    $region45: #{tpu_custom_call.1} parent=5 // pred_check
      %p944 = pneg %p943
    $region46: #{tpu_custom_call.1} parent=5 // pred_check_branch
      %946 = sbr.rel (%p944) target = $region48
    $region47: #{tpu_custom_call.1} parent=5 // pred_region
      %s947 = ssub.s32 %s11, 2
      // Predicated region
      $region49: #{tpu_custom_call.1} parent=47 // pred_check
        %p948 = pneg %p218
      $region50: #{tpu_custom_call.1} parent=47 // pred_check_branch
        %950 = sbr.rel (%p948) target = $region52
      $region51: #{tpu_custom_call.1} parent=47 // pred_region
        %p951 = scmp.lt.s32.totalorder %s27, 0
        %s952 = scalar_select %p951, %s27, 0
        %p953 = scmp.lt.s32.totalorder %s28, 3
        %s954 = scalar_select %p953, %s28, 3
        %p955 = scmp.lt.s32.totalorder %s29, 0
        %s956 = scalar_select %p955, %s29, 0
        %p957 = scmp.lt.s32.totalorder %s26, 0
        %s958 = scalar_select %p957, %s26, 0
        %s959 = smul.addr %s956, 8
        %s960 = sadd.s32 %s958, %s959
        %s961 = smul.addr %s954, 8
        %s962 = sadd.s32 %s960, %s961
        %s963 = smul.addr %s952, 32
        %s964 = sadd.s32 %s962, %s963
        %s965 = smul.addr %s964, 8
        %s966 = scalar_lea.vmem %s5, %s965
      $region52: #{tpu_custom_call.1} parent=47 // pred_fallthru
        _
    $region48: #{tpu_custom_call.1} parent=5 // pred_fallthru
      _
  $region6: #{tpu_custom_call.1} parent=0 // loop_footer
    %s15 = sadd.s32 1, %s11
  $region7: #{tpu_custom_call.1} parent=0 // loop_footer_branch
    %10 = sbr.rel target = $region3
  $region8: #{tpu_custom_call.1} parent=0 // loop_exit
    _

</llo_original>
